<compile_context>
chip_gen: v5e
topology: v5e:2x2
jax: 0.10.0
libtpu: 0.0.40
codegen_flags: <defaults>
</compile_context>

<pallas_src>
import functools

import numpy as np
import jax
import jax.numpy as jnp
from jax import lax
from jax.experimental import pallas as pl
from jax.experimental.pallas import tpu as pltpu

OUT_DIM = 512


def _round_up(x, m):
    return ((x + m - 1) // m) * m


def _pick_batch_tile(b, requested):
    """Largest divisor of b under a cap.

    A divisor means zero batch padding (the kernel is memory-bound, padded
    batches cost full price); the cap keeps >= 2 steps on the parallel batch
    grid axis whenever b >= 2 so both v7x TensorCores get work.
    """
    if requested is not None:
        cap = max(1, min(int(requested), b))
    else:
        cap = min(8, b) if b < 2 else min(8, max(1, b // 2))
    for cand in range(cap, 0, -1):
        if b % cand == 0:
            return cand
    return 1


def _vmem_budget_and_limit():
    """Generation-aware VMEM budget for the double-buffered input blocks."""
    cap = None
    try:
        cap = getattr(pltpu.get_tpu_info(), "vmem_capacity_bytes", None)
    except Exception:
        cap = None
    if not cap:
        cap = 64 * 1024 * 1024          # conservative fallback: v7x physical VMEM
    budget = min(cap // 3, 40 * 1024 * 1024)
    limit = min(budget + 12 * 1024 * 1024, (cap * 3) // 4)
    return int(budget), int(limit)


def tokenizer_kernel(mask_ref, codes_ref, w_ref, b_ref, out_ref,
                     sums_ref, area_ref, *, p_total, pt):
    # mask_ref : (bt, s_pad, pt)  int8 {0,1}; zero-padded, never out of bounds.
    # codes_ref: (bt, f, pt)      codes' native dtype; the last pixel tile may
    #                             read past H*W (invalid lanes zeroed below).
    # w_ref    : (f, 512) f32     b_ref : (1, 512) f32
    # out_ref  : (bt, s_pad, 512) out dtype
    # sums_ref : (bt, f, s_pad)   f32 scratch -- transposed masked sums over P
    # area_ref : (bt, s_pad, 1)   f32 scratch -- per-segment pixel counts
    k = pl.program_id(1)
    bt, f, s_pad = sums_ref.shape

    @pl.when(k == 0)
    def _init():
        sums_ref[...] = jnp.zeros_like(sums_ref)
        area_ref[...] = jnp.zeros_like(area_ref)

    m_bf = mask_ref[...].astype(jnp.bfloat16)            # (bt, s_pad, pt)

    c = codes_ref[...]                                    # (bt, f, pt) native dtype
    if p_total % pt != 0:
        # Last pixel tile reads past the unpadded codes array: zero the invalid
        # lanes so stale VMEM contents (possibly NaN) never reach the MXU.
        pix = lax.broadcasted_iota(jnp.int32, (1, 1, pt), 2) + k * pt
        c = jnp.where(pix < p_total, c, 0)
    c_bf = c.astype(jnp.bfloat16)                         # in-kernel VPU cast

    # sums^T[b, f, s] += sum_p codes[b, f, p] * mask[b, s, p]
    # The (pt, s) mask slab is the latched MXU operand; codes rows stream
    # against it, so weight reuse per latch scales with f (not with tiny s).
    sums_ref[...] += lax.dot_general(
        c_bf, m_bf,
        dimension_numbers=(((2,), (2,)), ((0,), (0,))),
        preferred_element_type=jnp.float32)

    # Exact per-segment pixel count (mask is 0/1; f32 accumulation).
    area_ref[...] += jnp.sum(m_bf, axis=2, keepdims=True, dtype=jnp.float32)

    @pl.when(k == pl.num_programs(1) - 1)
    def _finalize():
        w = w_ref[...]                                    # (f, 512)
        bias = b_ref[...]                                 # (1, 512)
        area = area_ref[...]                              # (bt, s_pad, 1)
        # Exact reciprocal (finalize runs once per batch tile; empty segments
        # get inv = 0 -> bias-only rows, matching the PyTorch forward).
        inv = jnp.where(area > 0.0, 1.0 / jnp.maximum(area, 1.0), 0.0)

        # Fused epilogue: one (bt*s_pad, f) @ (f, 512) matmul so W is latched
        # once and streamed with bt*s_pad rows instead of bt tiny matmuls.
        rows = [jnp.transpose(sums_ref[bi]) for bi in range(bt)]   # (s_pad, f)
        big = rows[0] if bt == 1 else jnp.concatenate(rows, axis=0)
        lin = jnp.dot(big, w, preferred_element_type=jnp.float32)  # (bt*s_pad, 512)

        for bi in range(bt):
            seg = lin[bi * s_pad:(bi + 1) * s_pad]        # (s_pad, 512)
            # row-scaling commutes with the linear: (sums*inv)@W == (sums@W)*inv
            out_ref[bi] = (seg * inv[bi] + bias).astype(out_ref.dtype)


def nearest_resize_mask_int8(segmap, H, W):
    """{0,1} int8 mask at codes resolution (compact, no full-res float pass).

    # TODO(synk): the nearest-neighbor upsample stays a tiny host-side int8
    # gather; a data-dependent in-kernel gather has no clean, portable Pallas
    # TPU lowering for arbitrary segmap resolutions.
    """
    b, s = segmap.shape[0], segmap.shape[1]
    h, w = segmap.shape[-2], segmap.shape[-1]
    seg_small = (segmap.reshape(b, s, h * w) != 0).astype(jnp.int8)
    rows = (jnp.arange(H, dtype=jnp.int32) * h) // H      # PyTorch 'nearest'
    cols = (jnp.arange(W, dtype=jnp.int32) * w) // W
    flat_idx = (rows[:, None] * w + cols[None, :]).reshape(-1)     # (H*W,)
    return jnp.take(seg_small, flat_idx, axis=2)                    # (b, s, H*W)


def tokenizer_forward(codes, segmap, w, bias, *, batch_tile=None,
                      vmem_budget_bytes=None):
    """codes: (b, f, H, W); segmap: (b, s, 1, h, w); w: (f, 512); bias: (512,)."""
    b, f, H, W = codes.shape
    s = segmap.shape[1]
    P = H * W
    out_dtype = codes.dtype

    s_pad = _round_up(max(s, 8), 8)
    bt = _pick_batch_tile(b, batch_tile)

    if vmem_budget_bytes is None:
        vmem_budget_bytes, vmem_limit = _vmem_budget_and_limit()
    else:
        vmem_limit = int(vmem_budget_bytes) + 12 * 1024 * 1024

    # Pixel tile: multiple of 128 sized to the double-buffered input budget,
    # then rebalanced so zero padding per tile is < 128 pixels.
    bytes_per_pixel = 2 * bt * (codes.dtype.itemsize * f + s_pad)
    pt_cap = max(128, (vmem_budget_bytes // bytes_per_pixel) // 128 * 128)
    p128 = _round_up(P, 128)
    n_p = pl.cdiv(p128, pt_cap)
    pt = _round_up(pl.cdiv(p128, n_p), 128)
    p_pad = n_p * pt

    # Compact int8 mask at codes resolution; zero-padded so mask blocks never
    # read out of bounds (padded pixels/segments contribute exactly zero).
    mask = nearest_resize_mask_int8(segmap, H, W)                   # (b, s, P)
    mask = jnp.pad(mask, ((0, 0), (0, s_pad - s), (0, p_pad - P)))

    # codes: metadata-only reshape; no host-side cast or pad (native dtype is
    # read by the kernel and cast to bf16 in VMEM right before the MXU).
    codes_flat = codes.reshape(b, f, P)

    w_f32 = w.astype(jnp.float32)
    bias2 = bias.astype(jnp.float32).reshape(1, OUT_DIM)

    grid = (b // bt, n_p)

    out = pl.pallas_call(
        functools.partial(tokenizer_kernel, p_total=P, pt=pt),
        out_shape=jax.ShapeDtypeStruct((b, s_pad, OUT_DIM), out_dtype),
        grid_spec=pltpu.PrefetchScalarGridSpec(
            num_scalar_prefetch=0,
            grid=grid,
            in_specs=[
                pl.BlockSpec((bt, s_pad, pt), lambda i, k: (i, 0, k)),
                pl.BlockSpec((bt, f, pt), lambda i, k: (i, 0, k)),
                pl.BlockSpec((f, OUT_DIM), lambda i, k: (0, 0)),
                pl.BlockSpec((1, OUT_DIM), lambda i, k: (0, 0)),
            ],
            out_specs=pl.BlockSpec((bt, s_pad, OUT_DIM), lambda i, k: (i, 0, 0)),
            scratch_shapes=[
                pltpu.VMEM((bt, f, s_pad), jnp.float32),
                pltpu.VMEM((bt, s_pad, 1), jnp.float32),
            ],
        ),
        compiler_params=pltpu.CompilerParams(
            dimension_semantics=("parallel", "arbitrary"),
            vmem_limit_bytes=int(vmem_limit),
        ),
    )(mask, codes_flat, w_f32, bias2)

    return out[:, :s, :]


def reference_forward(codes, segmap, w, bias):
    """Pure-numpy reference matching the PyTorch forward."""
    codes = np.asarray(codes, dtype=np.float32)
    segmap = np.asarray(segmap, dtype=np.float32)
    w = np.asarray(w, dtype=np.float32)
    bias = np.asarray(bias, dtype=np.float32)

    b, f, H, W = codes.shape
    s = segmap.shape[1]
    seg = segmap.reshape(b, s, segmap.shape[-2], segmap.shape[-1])
    h, wd = seg.shape[-2:]
    rows = (np.arange(H) * h) // H
    cols = (np.arange(W) * wd) // W
    seg = seg[:, :, rows][:, :, :, cols]                  # (b, s, H, W)

    codes_vector = np.zeros((b, s, f), dtype=np.float32)
    for i in range(b):
        for j in range(s):
            m = seg[i, j] != 0
            area = int(m.sum())
            if area > 0:
                sel = codes[i][:, m]                      # (f, area)
                codes_vector[i, j] = sel.mean(axis=1)
    return codes_vector @ w + bias


if __name__ == "__main__":
    key = jax.random.PRNGKey(0)
    k_codes, k_seg, k_w, k_b = jax.random.split(key, 4)

    B, F_IN, H, W = 2, 32, 16, 16          # codes: (b, inchl, H, W)
    S, h_seg, w_seg = 4, 8, 8              # segmap: (b, s, 1, h, w)

    codes = jax.random.normal(k_codes, (B, F_IN, H, W), dtype=jnp.float32)
    # Integer-ish segmentation map; some channels may have zero area.
    segmap = (jax.random.uniform(k_seg, (B, S, 1, h_seg, w_seg)) > 0.6).astype(
        jnp.float32)

    # Deterministic Linear(inchl, 512) parameters (PyTorch-style uniform init),
    # stored as weight.T, i.e. (inchl, 512).
    bound = 1.0 / np.sqrt(F_IN)
    w = jax.random.uniform(k_w, (F_IN, OUT_DIM), minval=-bound, maxval=bound,
                           dtype=jnp.float32)
    bias = jax.random.uniform(k_b, (OUT_DIM,), minval=-bound, maxval=bound,
                              dtype=jnp.float32)

    out = tokenizer_forward(codes, segmap, w, bias)
    out = jax.block_until_ready(out)

    ref = reference_forward(codes, segmap, w, bias)
    # bf16 codes on the MXU (f32 accumulate) -> looser tolerance than pure f32.
    np.testing.assert_allclose(np.asarray(out), ref, rtol=2e-2, atol=2e-2)

    print("KERNEL_OK")
</pallas_src>

<mosaic_0001>
module attributes {stable_mosaic.version = 11 : i64} {
  func.func @tokenizer_kernel(%arg0: i32, %arg1: i32, %arg2: memref<1x8x256xi8, #tpu.memory_space<vmem>>, %arg3: memref<1x32x256xf32, #tpu.memory_space<vmem>>, %arg4: memref<32x512xf32, #tpu.memory_space<vmem>>, %arg5: memref<1x512xf32, #tpu.memory_space<vmem>>, %arg6: memref<1x8x512xf32, #tpu.memory_space<vmem>>, %arg7: memref<1x32x8xf32, #tpu.memory_space<vmem>>, %arg8: memref<1x8x1xf32, #tpu.memory_space<vmem>>) attributes {dimension_semantics = [#tpu.dimension_semantics<parallel>, #tpu.dimension_semantics<arbitrary>], iteration_bounds = array<i64: 2, 1>, scalar_prefetch = 0 : i64, scratch_operands = 2 : i64, tpu.core_type = #tpu.core_type<tc>, window_params = [{transform_indices = @transform_0, window_bounds = array<i64: 1, 8, 256>}, {transform_indices = @transform_1, window_bounds = array<i64: 1, 32, 256>}, {pipeline_mode = #tpu.pipeline_mode<synchronous>, transform_indices = @transform_2, window_bounds = array<i64: 32, 512>}, {pipeline_mode = #tpu.pipeline_mode<synchronous>, transform_indices = @transform_3, window_bounds = array<i64: 1, 512>}, {transform_indices = @transform_4, window_bounds = array<i64: 1, 8, 512>}]} {
    %c0_i32 = arith.constant 0 : i32
    %0 = arith.cmpi eq, %arg1, %c0_i32 : i32
    %1 = arith.extui %0 : i1 to i32
    %c0_i32_0 = arith.constant 0 : i32
    %2 = arith.cmpi ne, %1, %c0_i32_0 : i32
    scf.if %2 {
      %cst_21 = arith.constant 0.000000e+00 : f32
      %20 = vector.broadcast %cst_21 : f32 to vector<1x32x8xf32>
      %c0_22 = arith.constant 0 : index
      %c0_23 = arith.constant 0 : index
      %c0_24 = arith.constant 0 : index
      %21 = vector.load %arg7[%c0_22, %c0_23, %c0_24] : memref<1x32x8xf32, #tpu.memory_space<vmem>>, vector<1x32x8xf32>
      tpu.vector_store %arg7[%c0_22, %c0_23, %c0_24], %20 {strides = array<i32>} : memref<1x32x8xf32, #tpu.memory_space<vmem>>, vector<1x32x8xf32>,
      %cst_25 = arith.constant 0.000000e+00 : f32
      %22 = vector.broadcast %cst_25 : f32 to vector<1x8x1xf32>
      %c0_26 = arith.constant 0 : index
      %c0_27 = arith.constant 0 : index
      %c0_28 = arith.constant 0 : index
      %23 = vector.load %arg8[%c0_26, %c0_27, %c0_28] : memref<1x8x1xf32, #tpu.memory_space<vmem>>, vector<1x8x1xf32>
      tpu.vector_store %arg8[%c0_26, %c0_27, %c0_28], %22 {strides = array<i32>} : memref<1x8x1xf32, #tpu.memory_space<vmem>>, vector<1x8x1xf32>,
    } else {
    }
    %c0 = arith.constant 0 : index
    %c0_1 = arith.constant 0 : index
    %c0_2 = arith.constant 0 : index
    %3 = vector.load %arg2[%c0, %c0_1, %c0_2] : memref<1x8x256xi8, #tpu.memory_space<vmem>>, vector<1x8x256xi8>
    %4 = arith.sitofp %3 : vector<1x8x256xi8> to vector<1x8x256xbf16>
    %c0_3 = arith.constant 0 : index
    %c0_4 = arith.constant 0 : index
    %c0_5 = arith.constant 0 : index
    %5 = vector.load %arg3[%c0_3, %c0_4, %c0_5] : memref<1x32x256xf32, #tpu.memory_space<vmem>>, vector<1x32x256xf32>
    %6 = arith.truncf %5 : vector<1x32x256xf32> to vector<1x32x256xbf16>
    %c0_6 = arith.constant 0 : index
    %c0_7 = arith.constant 0 : index
    %c0_8 = arith.constant 0 : index
    %7 = vector.load %arg7[%c0_6, %c0_7, %c0_8] : memref<1x32x8xf32, #tpu.memory_space<vmem>>, vector<1x32x8xf32>
    %cst = arith.constant dense<0.000000e+00> : vector<1x32x8xf32>
    %8 = tpu.matmul %6, %4, %cst {dimension_numbers = #tpu.dot_dimension_numbers<[2], [2], [1], [1], [0, 0, 0, 1, 1, 1], [0], [0]>} : vector<1x32x256xbf16>, vector<1x8x256xbf16>, vector<1x32x8xf32> -> vector<1x32x8xf32>
    %9 = arith.addf %7, %8 : vector<1x32x8xf32>
    %c0_9 = arith.constant 0 : index
    %c0_10 = arith.constant 0 : index
    %c0_11 = arith.constant 0 : index
    %10 = vector.load %arg7[%c0_9, %c0_10, %c0_11] : memref<1x32x8xf32, #tpu.memory_space<vmem>>, vector<1x32x8xf32>
    tpu.vector_store %arg7[%c0_9, %c0_10, %c0_11], %9 {strides = array<i32>} : memref<1x32x8xf32, #tpu.memory_space<vmem>>, vector<1x32x8xf32>,
    %c0_12 = arith.constant 0 : index
    %c0_13 = arith.constant 0 : index
    %c0_14 = arith.constant 0 : index
    %11 = vector.load %arg8[%c0_12, %c0_13, %c0_14] : memref<1x8x1xf32, #tpu.memory_space<vmem>>, vector<1x8x1xf32>
    %12 = arith.extf %4 : vector<1x8x256xbf16> to vector<1x8x256xf32>
    %cst_15 = arith.constant dense<0.000000e+00> : vector<1x8xf32>
    %13 = vector.multi_reduction <add>, %12, %cst_15 [2] : vector<1x8x256xf32> to vector<1x8xf32>
    %14 = vector.shape_cast %13 : vector<1x8xf32> to vector<1x8x1xf32>
    %15 = arith.addf %11, %14 : vector<1x8x1xf32>
    %c0_16 = arith.constant 0 : index
    %c0_17 = arith.constant 0 : index
    %c0_18 = arith.constant 0 : index
    %16 = vector.load %arg8[%c0_16, %c0_17, %c0_18] : memref<1x8x1xf32, #tpu.memory_space<vmem>>, vector<1x8x1xf32>
    tpu.vector_store %arg8[%c0_16, %c0_17, %c0_18], %15 {strides = array<i32>} : memref<1x8x1xf32, #tpu.memory_space<vmem>>, vector<1x8x1xf32>,
    %c0_i32_19 = arith.constant 0 : i32
    %17 = arith.cmpi eq, %arg1, %c0_i32_19 : i32
    %18 = arith.extui %17 : i1 to i32
    %c0_i32_20 = arith.constant 0 : i32
    %19 = arith.cmpi ne, %18, %c0_i32_20 : i32
    scf.if %19 {
      %c0_21 = arith.constant 0 : index
      %c0_22 = arith.constant 0 : index
      %20 = vector.load %arg4[%c0_21, %c0_22] : memref<32x512xf32, #tpu.memory_space<vmem>>, vector<32x512xf32>
      %c0_23 = arith.constant 0 : index
      %c0_24 = arith.constant 0 : index
      %21 = vector.load %arg5[%c0_23, %c0_24] : memref<1x512xf32, #tpu.memory_space<vmem>>, vector<1x512xf32>
      %c0_25 = arith.constant 0 : index
      %c0_26 = arith.constant 0 : index
      %c0_27 = arith.constant 0 : index
      %22 = vector.load %arg8[%c0_25, %c0_26, %c0_27] : memref<1x8x1xf32, #tpu.memory_space<vmem>>, vector<1x8x1xf32>
      %cst_28 = arith.constant 0.000000e+00 : f32
      %23 = vector.broadcast %cst_28 : f32 to vector<1x8x1xf32>
      %24 = arith.cmpf ogt, %22, %23 : vector<1x8x1xf32>
      %cst_29 = arith.constant 1.000000e+00 : f32
      %25 = vector.broadcast %cst_29 : f32 to vector<1x8x1xf32>
      %26 = arith.maximumf %22, %25 : vector<1x8x1xf32>
      %cst_30 = arith.constant 1.000000e+00 : f32
      %27 = vector.broadcast %cst_30 : f32 to vector<1x8x1xf32>
      %28 = arith.divf %27, %26 : vector<1x8x1xf32>
      %cst_31 = arith.constant 0.000000e+00 : f32
      %29 = vector.broadcast %cst_31 : f32 to vector<1x8x1xf32>
      %30 = arith.select %24, %28, %29 : vector<1x8x1xi1>, vector<1x8x1xf32>
      %c0_32 = arith.constant 0 : index
      %c0_33 = arith.constant 0 : index
      %c0_34 = arith.constant 0 : index
      %31 = vector.load %arg7[%c0_32, %c0_33, %c0_34] : memref<1x32x8xf32, #tpu.memory_space<vmem>>, vector<1x32x8xf32>
      %32 = vector.shape_cast %31 : vector<1x32x8xf32> to vector<32x8xf32>
      %33 = tpu.transpose %32, [1, 0] : vector<32x8xf32> -> vector<8x32xf32>
      %cst_35 = arith.constant dense<0.000000e+00> : vector<8x512xf32>
      %34 = tpu.matmul %33, %20, %cst_35 {dimension_numbers = #tpu.dot_dimension_numbers<[1], [0], [0], [1], [0, 0, 1, 1], [], []>} : vector<8x32xf32>, vector<32x512xf32>, vector<8x512xf32> -> vector<8x512xf32>
      %35 = vector.shape_cast %30 : vector<1x8x1xf32> to vector<8x1xf32>
      %36 = vector.broadcast %35 : vector<8x1xf32> to vector<8x512xf32>
      %37 = arith.mulf %34, %36 : vector<8x512xf32>
      %38 = vector.broadcast %21 : vector<1x512xf32> to vector<8x512xf32>
      %39 = arith.addf %37, %38 : vector<8x512xf32>
      %c0_36 = arith.constant 0 : index
      %c0_37 = arith.constant 0 : index
      %c0_38 = arith.constant 0 : index
      %40 = vector.load %arg6[%c0_36, %c0_37, %c0_38] : memref<1x8x512xf32, #tpu.memory_space<vmem>>, vector<1x8x512xf32>
      %41 = vector.shape_cast %40 : vector<1x8x512xf32> to vector<8x512xf32>
      %42 = vector.shape_cast %39 : vector<8x512xf32> to vector<1x8x512xf32>
      tpu.vector_store %arg6[%c0_36, %c0_37, %c0_38], %42 {strides = array<i32>} : memref<1x8x512xf32, #tpu.memory_space<vmem>>, vector<1x8x512xf32>,
    } else {
    }
    return
  }
  func.func @transform_0(%arg0: i32, %arg1: i32) -> (i32, i32, i32) {
    %c0_i32 = arith.constant 0 : i32
    %c0_i32_0 = arith.constant 0 : i32
    return %arg0, %c0_i32, %arg1 : i32, i32, i32
  }
  func.func @transform_1(%arg0: i32, %arg1: i32) -> (i32, i32, i32) {
    %c0_i32 = arith.constant 0 : i32
    %c0_i32_0 = arith.constant 0 : i32
    return %arg0, %c0_i32, %arg1 : i32, i32, i32
  }
  func.func @transform_2(%arg0: i32, %arg1: i32) -> (i32, i32) {
    %c0_i32 = arith.constant 0 : i32
    %c0_i32_0 = arith.constant 0 : i32
    %c0_i32_1 = arith.constant 0 : i32
    return %c0_i32, %c0_i32_0 : i32, i32
  }
  func.func @transform_3(%arg0: i32, %arg1: i32) -> (i32, i32) {
    %c0_i32 = arith.constant 0 : i32
    %c0_i32_0 = arith.constant 0 : i32
    %c0_i32_1 = arith.constant 0 : i32
    return %c0_i32, %c0_i32_0 : i32, i32
  }
  func.func @transform_4(%arg0: i32, %arg1: i32) -> (i32, i32, i32) {
    %c0_i32 = arith.constant 0 : i32
    %c0_i32_0 = arith.constant 0 : i32
    %c0_i32_1 = arith.constant 0 : i32
    return %arg0, %c0_i32, %c0_i32_0 : i32, i32, i32
  }
}

</mosaic_0001>

<llo_original>
// kernel: tpu_custom_call.1
$region0: #{tpu_custom_call.1}
  #allocation0 [shape = 'u32[]', space=smem, size = 0x4, offset = 0x4, fixed_abs, tag = 'smem constant byte address 0x4 - core index']
  #allocation1 [shape = 'u32[72,128]{1,0:T(1,128)}', space=vmem, size = 0x9000, scoped, tag = 'internal scratch']
  #allocation2 [shape = 'f32[1,32,8]{2,1,0:T(8,128)}', space=vmem, size = 0x4000, scoped, tag = 'scratch operand']
  #allocation3 [shape = 'f32[1,8,1]{2,1,0:T(8,128)}', space=vmem, size = 0x1000, scoped, tag = 'scratch operand']
  %s0 = inlined_call_operand.hbm [shape: s8[2,8,256], index: 0, kind: input, shape index: {}]
  %s1 = inlined_call_operand.hbm [shape: f32[2,32,256], index: 1, kind: input, shape index: {}]
  %s2 = inlined_call_operand.hbm [shape: f32[32,512], index: 2, kind: input, shape index: {}]
  %s3 = inlined_call_operand.hbm [shape: f32[1,512], index: 3, kind: input, shape index: {}]
  %s4 = inlined_call_operand.hbm [shape: f32[2,8,512], index: 4, kind: output, shape index: {}]
  %s5 = sld [smem:[#allocation0]]
  $region73: #{tpu_custom_call.1} parent=0
    _
  %s7 = ssub.s32 1, %s5
  %s8 = scalar_select 0, %s7, %s5
  $region1: #{tpu_custom_call.1} parent=0
    #allocation4 [shape = 'u8[4096]{0}', space=vmem, size = 0x1000, scoped, tag = 'input window, operand 0']
    #allocation5 [shape = 's32[2]{0}', space=sflag, size = 0x8, scoped, tag = 'scoped memory for tpu_custom_call.1']
    #allocation6 [shape = 's32[2]{0}', space=sflag, size = 0x8, scoped, tag = 'scoped memory for tpu_custom_call.1']
    #allocation7 [shape = 'u8[65536]{0}', space=vmem, size = 0x10000, scoped, tag = 'input window, operand 1']
    #allocation8 [shape = 's32[2]{0}', space=sflag, size = 0x8, scoped, tag = 'scoped memory for tpu_custom_call.1']
    #allocation9 [shape = 'u8[65536]{0}', space=vmem, size = 0x10000, scoped, tag = 'input window, operand 2, single buffered']
    #allocation10 [shape = 'u8[2048]{0}', space=vmem, size = 0x800, scoped, tag = 'input window, operand 3, single buffered']
    #allocation11 [shape = 's32[1]{0}', space=sflag, size = 0x4, scoped, tag = 'scoped memory for tpu_custom_call.1']
    #allocation12 [shape = 'u8[32768]{0}', space=vmem, size = 0x8000, scoped, tag = 'output window, operand 0']
    %9 = vsyncpa [#allocation5], 0
    %s10 = scalar_lea.sflag [#allocation5], 1
    %11 = vsyncpa %s10, 0
    %12 = vsyncpa [#allocation8], 0
    %s13 = scalar_lea.sflag [#allocation8], 1
    %14 = vsyncpa %s13, 0
    %15 = vsyncpa [#allocation11], 0
    %16 = vsyncpa [#allocation6], 0
    %s17 = scalar_lea.sflag [#allocation6], 1
    %18 = vsyncpa %s17, 0
    loop: start=0, step=1, limit=4
    $region2: #{tpu_custom_call.1} parent=1 // loop_pre_header
      _
    $region3: #{tpu_custom_call.1} parent=1 // loop_header
      %s20 = sphi 0, %s24
      %p21 = scmp.ge.s32.totalorder %s20, 4
      %s27 = sphi 0, %s39
      %s28 = sphi 0, %s35
      %s29 = sphi 0, %s27
      %s30 = sphi 0, %s28
      %s31 = sphi 0, %s29
      %s32 = sphi 0, %s30
      %s44 = sphi 0, %s46
      %s47 = sphi 0, %s44
      %s48 = sphi 0, %s47
      %s64 = sphi 0, %s48
      %s72 = sphi 0, %s74
      %s75 = sphi 0, %s72
      %s76 = sphi 0, %s75
      %s92 = sphi 0, %s76
      %s96 = sphi 0, %s96
      %s98 = sphi 0, %s96
      %s99 = sphi 0, %s98
      %s113 = sphi 0, %s99
      %s117 = sphi 0, %s117
      %s119 = sphi 0, %s117
      %s120 = sphi 0, %s119
      %s134 = sphi 0, %s120
      %s140 = sphi 0, %s142
      %s143 = sphi 0, %s140
      %s144 = sphi 0, %s143
      %s160 = sphi 0, %s144
    $region4: #{tpu_custom_call.1} parent=1 // loop_header_branch
      %23 = sbr.rel (%p21) target = $region8
    $region5: #{tpu_custom_call.1} parent=1 // loop_body
      %s25 = ssub.s32 %s20, 1
      %s26 = ssub.s32 %s20, 2
      %s33 = sadd.s32 1, %s28
      %p34 = scmp.ge.s32.totalorder %s33, 1
      %s35 = scalar_select %p34, 0, %s33
      %s36 = sadd.s32 1, %s27
      %s37 = scalar_select %p34, %s36, %s27
      %p38 = scmp.ge.s32.totalorder %s37, 2
      %s39 = scalar_select %p38, 0, %s37
      %s40 = ssub.s32 %s27, %s39
      %s41 = ssub.s32 %s28, %s35
      %s42 = sor.u32 %s40, %s41
      %p43 = scmp.eq.s32.totalorder %s42, 0
      %s45 = sadd.s32 %s44, 1
      %s46 = scalar_select %p43, %s44, %s45
      %p49 = pneg %p43
      %p50 = scmp.eq.s32.totalorder %s20, 1
      %p51 = por %p49, %p50
      %p52 = scmp.ne.s32.totalorder %s44, %s47
      %p53 = scmp.eq.s32.totalorder %s20, 0
      %p54 = por %p52, %p53
      %p55 = scmp.ne.s32.totalorder %s44, %s47
      %p56 = scmp.eq.s32.totalorder %s25, 1
      %p57 = por %p55, %p56
      %p58 = scmp.ne.s32.totalorder %s47, %s48
      %p59 = scmp.eq.s32.totalorder %s25, 0
      %p60 = por %p58, %p59
      %p61 = scmp.ne.s32.totalorder %s47, %s48
      %p62 = scmp.eq.s32.totalorder %s26, 1
      %p63 = por %p61, %p62
      %p65 = scmp.ne.s32.totalorder %s48, %s64
      %p66 = scmp.eq.s32.totalorder %s26, 0
      %p67 = por %p65, %p66
      %s68 = ssub.s32 %s27, %s39
      %s69 = ssub.s32 %s28, %s35
      %s70 = sor.u32 %s68, %s69
      %p71 = scmp.eq.s32.totalorder %s70, 0
      %s73 = sadd.s32 %s72, 1
      %s74 = scalar_select %p71, %s72, %s73
      %p77 = pneg %p71
      %p78 = scmp.eq.s32.totalorder %s20, 1
      %p79 = por %p77, %p78
      %p80 = scmp.ne.s32.totalorder %s72, %s75
      %p81 = scmp.eq.s32.totalorder %s20, 0
      %p82 = por %p80, %p81
      %p83 = scmp.ne.s32.totalorder %s72, %s75
      %p84 = scmp.eq.s32.totalorder %s25, 1
      %p85 = por %p83, %p84
      %p86 = scmp.ne.s32.totalorder %s75, %s76
      %p87 = scmp.eq.s32.totalorder %s25, 0
      %p88 = por %p86, %p87
      %p89 = scmp.ne.s32.totalorder %s75, %s76
      %p90 = scmp.eq.s32.totalorder %s26, 1
      %p91 = por %p89, %p90
      %p93 = scmp.ne.s32.totalorder %s76, %s92
      %p94 = scmp.eq.s32.totalorder %s26, 0
      %p95 = por %p93, %p94
      %s97 = sadd.s32 %s96, 1
      %p100 = scmp.eq.s32.totalorder %s20, 1
      %p101 = scmp.ne.s32.totalorder %s96, %s98
      %p102 = scmp.eq.s32.totalorder %s20, 0
      %p103 = por %p101, %p102
      %p104 = scmp.ne.s32.totalorder %s96, %s98
      %p105 = scmp.eq.s32.totalorder %s25, 1
      %p106 = por %p104, %p105
      %p107 = scmp.ne.s32.totalorder %s98, %s99
      %p108 = scmp.eq.s32.totalorder %s25, 0
      %p109 = por %p107, %p108
      %p110 = scmp.ne.s32.totalorder %s98, %s99
      %p111 = scmp.eq.s32.totalorder %s26, 1
      %p112 = por %p110, %p111
      %p114 = scmp.ne.s32.totalorder %s99, %s113
      %p115 = scmp.eq.s32.totalorder %s26, 0
      %p116 = por %p114, %p115
      %s118 = sadd.s32 %s117, 1
      %p121 = scmp.eq.s32.totalorder %s20, 1
      %p122 = scmp.ne.s32.totalorder %s117, %s119
      %p123 = scmp.eq.s32.totalorder %s20, 0
      %p124 = por %p122, %p123
      %p125 = scmp.ne.s32.totalorder %s117, %s119
      %p126 = scmp.eq.s32.totalorder %s25, 1
      %p127 = por %p125, %p126
      %p128 = scmp.ne.s32.totalorder %s119, %s120
      %p129 = scmp.eq.s32.totalorder %s25, 0
      %p130 = por %p128, %p129
      %p131 = scmp.ne.s32.totalorder %s119, %s120
      %p132 = scmp.eq.s32.totalorder %s26, 1
      %p133 = por %p131, %p132
      %p135 = scmp.ne.s32.totalorder %s120, %s134
      %p136 = scmp.eq.s32.totalorder %s26, 0
      %p137 = por %p135, %p136
      %s138 = ssub.s32 %s27, %s39
      %p139 = scmp.eq.s32.totalorder %s138, 0
      %s141 = sadd.s32 %s140, 1
      %s142 = scalar_select %p139, %s140, %s141
      %p145 = pneg %p139
      %p146 = scmp.eq.s32.totalorder %s20, 1
      %p147 = por %p145, %p146
      %p148 = scmp.ne.s32.totalorder %s140, %s143
      %p149 = scmp.eq.s32.totalorder %s20, 0
      %p150 = por %p148, %p149
      %p151 = scmp.ne.s32.totalorder %s140, %s143
      %p152 = scmp.eq.s32.totalorder %s25, 1
      %p153 = por %p151, %p152
      %p154 = scmp.ne.s32.totalorder %s143, %s144
      %p155 = scmp.eq.s32.totalorder %s25, 0
      %p156 = por %p154, %p155
      %p157 = scmp.ne.s32.totalorder %s143, %s144
      %p158 = scmp.eq.s32.totalorder %s26, 1
      %p159 = por %p157, %p158
      %p161 = scmp.ne.s32.totalorder %s144, %s160
      %p162 = scmp.eq.s32.totalorder %s26, 0
      %p163 = por %p161, %p162
      %p164 = scmp.le.s32.totalorder 1, %s20
      %p165 = scmp.lt.s32.totalorder %s20, 3
      %p166 = pnand %p164, %p165
      %p167 = pneg %p166
      // Predicated region
      $region9: #{tpu_custom_call.1} parent=5 // pred_check
        _
      $region10: #{tpu_custom_call.1} parent=5 // pred_check_branch
        %169 = sbr.rel (%p166) target = $region12
      $region11: #{tpu_custom_call.1} parent=5 // pred_region
        %s170 = ssub.s32 %s20, 1
        // Predicated region
        $region13: #{tpu_custom_call.1} parent=11 // pred_check
          %p171 = pneg %p109
        $region14: #{tpu_custom_call.1} parent=11 // pred_check_branch
          %173 = sbr.rel (%p171) target = $region16
        $region15: #{tpu_custom_call.1} parent=11 // pred_region
          %175 = vsyncadd [#allocation8], 0
          %s176 = sshll.u32 %s2, 4
          %s177 = int_to_ptr.hbm [resolvable:$true] %s176
          %s178 = sshll.u32 [#allocation9], 4
          %s179 = int_to_ptr.vmem [resolvable:$true] %s178
          %184 = dma.hbm_to_vmem [thread:$0]  %s177, 2048, %s179, [#allocation8], 512, 512, 32
        $region16: #{tpu_custom_call.1} parent=11 // pred_fallthru
          _
        // Predicated region
        $region17: #{tpu_custom_call.1} parent=11 // pred_check
          %p185 = pneg %p130
        $region18: #{tpu_custom_call.1} parent=11 // pred_check_branch
          %187 = sbr.rel (%p185) target = $region20
        $region19: #{tpu_custom_call.1} parent=11 // pred_region
          %189 = vsyncadd [#allocation11], 0
          %s191 = sshll.u32 %s3, 4
          %s192 = int_to_ptr.hbm [resolvable:$true] %s191
          %s193 = sshll.u32 [#allocation10], 4
          %s194 = int_to_ptr.vmem [resolvable:$true] %s193
          %196 = dma.hbm_to_vmem [thread:$0]  %s192, 64, %s194, [#allocation11]
        $region20: #{tpu_custom_call.1} parent=11 // pred_fallthru
          _
      $region12: #{tpu_custom_call.1} parent=5 // pred_fallthru
        _
      %p197 = scmp.lt.s32.totalorder %s20, 2
      // Predicated region
      $region21: #{tpu_custom_call.1} parent=5 // pred_check
        %p198 = pneg %p197
      $region22: #{tpu_custom_call.1} parent=5 // pred_check_branch
        %200 = sbr.rel (%p198) target = $region24
      $region23: #{tpu_custom_call.1} parent=5 // pred_region
        // Predicated region
        $region25: #{tpu_custom_call.1} parent=23 // pred_check
          %p201 = pneg %p54
        $region26: #{tpu_custom_call.1} parent=23 // pred_check_branch
          %203 = sbr.rel (%p201) target = $region28
        $region27: #{tpu_custom_call.1} parent=23 // pred_region
          %s204 = sand.u32 %s44, 1
          %s205 = scalar_lea.sflag [#allocation5], %s204
          %s206 = sand.u32 %s44, 1
          %s207 = smul.addr %s206, 4
          %s208 = scalar_lea.vmem [#allocation4], %s207
          %s209 = smul.u32 2, %s28
          %211 = vsyncadd %s205, 0
          %s212 = smul.addr %s27, 2
          %s213 = sadd.s32 %s209, %s212
          %s214 = smul.addr %s213, 2
          %s215 = scalar_lea.hbm %s0, %s214
          %s217 = sshll.u32 %s215, 4
          %s218 = int_to_ptr.hbm [resolvable:$true] %s217
          %s219 = sshll.u32 %s208, 4
          %s220 = int_to_ptr.vmem [resolvable:$true] %s219
          %222 = dma.hbm_to_vmem [thread:$0]  %s218, 64, %s220, %s205
        $region28: #{tpu_custom_call.1} parent=23 // pred_fallthru
          _
        // Predicated region
        $region29: #{tpu_custom_call.1} parent=23 // pred_check
          %p223 = pneg %p82
        $region30: #{tpu_custom_call.1} parent=23 // pred_check_branch
          %225 = sbr.rel (%p223) target = $region32
        $region31: #{tpu_custom_call.1} parent=23 // pred_region
          %s226 = sand.u32 %s20, 1
          %s227 = scalar_lea.sflag [#allocation8], %s226
          %s228 = sand.u32 %s72, 1
          %s229 = smul.addr %s228, 64
          %s230 = scalar_lea.vmem [#allocation7], %s229
          %s231 = smul.u32 2, %s28
          %233 = vsyncadd %s227, 0
          %s234 = smul.addr %s27, 8
          %s235 = sadd.s32 %s231, %s234
          %s236 = smul.addr %s235, 8
          %s237 = scalar_lea.hbm %s1, %s236
          %s238 = sshll.u32 %s237, 4
          %s239 = int_to_ptr.hbm [resolvable:$true] %s238
          %s240 = sshll.u32 %s230, 4
          %s241 = int_to_ptr.vmem [resolvable:$true] %s240
          %246 = dma.hbm_to_vmem [thread:$0]  %s239, 1024, %s241, %s227, 256, 256, 16
        $region32: #{tpu_custom_call.1} parent=23 // pred_fallthru
          _
      $region24: #{tpu_custom_call.1} parent=5 // pred_fallthru
        _
      %p247 = scmp.le.s32.totalorder 1, %s20
      %p248 = scmp.lt.s32.totalorder %s20, 3
      %p249 = pnand %p247, %p248
      %p250 = pneg %p249
      // Predicated region
      $region33: #{tpu_custom_call.1} parent=5 // pred_check
        _
      $region34: #{tpu_custom_call.1} parent=5 // pred_check_branch
        %252 = sbr.rel (%p249) target = $region36
      $region35: #{tpu_custom_call.1} parent=5 // pred_region
        %s253 = ssub.s32 %s20, 1
        %s254 = sand.u32 %s47, 1
        %s255 = scalar_lea.sflag [#allocation5], %s254
        %s256 = sand.u32 %s47, 1
        %s257 = smul.addr %s256, 4
        %s258 = scalar_lea.vmem [#allocation4], %s257
        // Predicated region
        $region37: #{tpu_custom_call.1} parent=35 // pred_check
          %p259 = pneg %p60
        $region38: #{tpu_custom_call.1} parent=35 // pred_check_branch
          %261 = sbr.rel (%p259) target = $region40
        $region39: #{tpu_custom_call.1} parent=35 // pred_region
          %263 = dma.done %s255, 64
        $region40: #{tpu_custom_call.1} parent=35 // pred_fallthru
          _
        %s264 = sand.u32 %s25, 1
        %s265 = scalar_lea.sflag [#allocation8], %s264
        %s266 = sand.u32 %s75, 1
        %s267 = smul.addr %s266, 64
        %s268 = scalar_lea.vmem [#allocation7], %s267
        // Predicated region
        $region41: #{tpu_custom_call.1} parent=35 // pred_check
          %p269 = pneg %p88
        $region42: #{tpu_custom_call.1} parent=35 // pred_check_branch
          %271 = sbr.rel (%p269) target = $region44
        $region43: #{tpu_custom_call.1} parent=35 // pred_region
          %273 = dma.done %s265, 1024
        $region44: #{tpu_custom_call.1} parent=35 // pred_fallthru
          _
        // Predicated region
        $region45: #{tpu_custom_call.1} parent=35 // pred_check
          %p274 = pneg %p109
        $region46: #{tpu_custom_call.1} parent=35 // pred_check_branch
          %276 = sbr.rel (%p274) target = $region48
        $region47: #{tpu_custom_call.1} parent=35 // pred_region
          %278 = dma.done [#allocation8], 2048
        $region48: #{tpu_custom_call.1} parent=35 // pred_fallthru
          _
        // Predicated region
        $region49: #{tpu_custom_call.1} parent=35 // pred_check
          %p279 = pneg %p130
        $region50: #{tpu_custom_call.1} parent=35 // pred_check_branch
          %281 = sbr.rel (%p279) target = $region52
        $region51: #{tpu_custom_call.1} parent=35 // pred_region
          %283 = dma.done [#allocation11], 64
        $region52: #{tpu_custom_call.1} parent=35 // pred_fallthru
          _
        %s284 = sand.u32 %s47, 1
        %s285 = scalar_lea.sflag [#allocation5], %s284
        %s286 = sand.u32 %s47, 1
        %s287 = smul.addr %s286, 4
        %s288 = scalar_lea.vmem [#allocation4], %s287
        %p289 = pneg %p60
        %p290 = pneg %p57
        %s291 = sand.u32 %s25, 1
        %s292 = scalar_lea.sflag [#allocation8], %s291
        %s293 = sand.u32 %s75, 1
        %s294 = smul.addr %s293, 64
        %s295 = scalar_lea.vmem [#allocation7], %s294
        %p296 = pneg %p88
        %p297 = pneg %p85
        %p298 = pneg %p109
        %p299 = pneg %p106
        %p300 = pneg %p130
        %p301 = pneg %p127
        %p302 = pneg %p156
        %p303 = pneg %p153
        %s304 = sand.u32 %s143, 1
        %s305 = scalar_lea.sflag [#allocation6], %s304
        %s306 = sand.u32 %s143, 1
        %s307 = smul.addr %s306, 32
        %s308 = scalar_lea.vmem [#allocation12], %s307
        %s309 = smul.u32 2, %s30
        %s310 = smul.u32 2, %s30
        %p312 = scmp.eq.s32.totalorder %s30, 0
        // Predicated region
        $region53: #{tpu_custom_call.1} parent=35 // pred_check
          %p313 = pneg %p312
        $region54: #{tpu_custom_call.1} parent=35 // pred_check_branch
          %315 = sbr.rel (%p313) target = $region56
        $region55: #{tpu_custom_call.1} parent=35 // pred_region
          %vm316 = vcmask 64512
          %317 = vst.msk [vmem:[#allocation2] sm:$0xff] %vm316, 0.0
          %318 = vst.msk [vmem:[#allocation2 + $0x8] sm:$0xff] %vm316, 0.0
          %319 = vst.msk [vmem:[#allocation2 + $0x10] sm:$0xff] %vm316, 0.0
          %320 = vst.msk [vmem:[#allocation2 + $0x18] sm:$0xff] %vm316, 0.0
          %vm321 = vcmask 7168
          %322 = vst.msk [vmem:[#allocation3] sm:$0xff] %vm321, 0.0
        $region56: #{tpu_custom_call.1} parent=35 // pred_fallthru
          _
        %v323 = vld [vmem:[%s258] sm:$0xf]
        %v324 = vunpack.c.0.s8 %v323
        %v325 = vunpack.c.1.s8 %v323
        %v326 = vcvt.s32.f32 %v324
        %v327 = vcvt.s32.f32 %v325
        %v328 = vpack.c.bf16 %v327, %v326
        %v329 = vld [vmem:[%s268] sm:$0xff]
        %v330 = vld [vmem:[%s268 + $0x8] sm:$0xff]
        %v331 = vld [vmem:[%s268 + $0x10] sm:$0xff]
        %v332 = vld [vmem:[%s268 + $0x18] sm:$0xff]
        %v333 = vld [vmem:[%s268 + $0x20] sm:$0xff]
        %v334 = vld [vmem:[%s268 + $0x28] sm:$0xff]
        %v335 = vld [vmem:[%s268 + $0x30] sm:$0xff]
        %v336 = vld [vmem:[%s268 + $0x38] sm:$0xff]
        %v337 = vpack.c.bf16 %v330, %v329
        %v338 = vpack.c.bf16 %v332, %v331
        %v339 = vpack.c.bf16 %v334, %v333
        %v340 = vpack.c.bf16 %v336, %v335
        %v341 = vld [vmem:[#allocation2] sm:$0xff]
        %v342 = vld [vmem:[#allocation2 + $0x8] sm:$0xff]
        %v343 = vld [vmem:[#allocation2 + $0x10] sm:$0xff]
        %v344 = vld [vmem:[#allocation2 + $0x18] sm:$0xff]
        %v349 = vunpack.c.l.b16 %v337
        %v350 = vunpack.c.h.b16 %v337
        %v351 = vunpack.c.l.b16 %v338
        %v352 = vunpack.c.h.b16 %v338
        %v353 = vunpack.c.l.b16 %v339
        %v354 = vunpack.c.h.b16 %v339
        %v355 = vunpack.c.l.b16 %v340
        %v356 = vunpack.c.h.b16 %v340
        %v357 = vpack.c.b16 %v351, %v349
        %v358 = vpack.c.b16 %v352, %v350
        %v359 = vpack.c.b16 %v355, %v353
        %v360 = vpack.c.b16 %v356, %v354
        %v366 = vunpack.c.l.b16 %v328
        %v367 = vunpack.c.h.b16 %v328
        %v368 = vpack.c.b16 %v366, %v366
        %v369 = vpack.c.b16 %v367, %v367
        %372 = vmatpush.bf16.xpose.msra.mxu0 0
        %373 = vmatpush.bf16.xpose.msra.mxu0 0
        %374 = vmatpush.bf16.xpose.msra.mxu0 0
        %375 = vmatpush.bf16.xpose.msra.mxu0 0
        %376 = vmatpush.bf16.xpose.msra.mxu0 0
        %377 = vmatpush.bf16.xpose.msra.mxu0 0
        %378 = vmatpush.bf16.xpose.msra.mxu0 0
        %379 = vmatpush.bf16.xpose.msra.mxu0 %v368
        %380 = vmatmul.bf16.gmra.mxu0 %v357
        %v381 = vpop.f32.mrf.mxu0
        %v382 = vadd.f32 0.0, %v381
        %v383 = vpop.f32.mrf.mxu0
        %v384 = vadd.f32 0.0, %v383
        %385 = vmatmul.bf16.gmra.mxu0 %v359
        %v386 = vpop.f32.mrf.mxu0
        %v387 = vadd.f32 0.0, %v386
        %v388 = vpop.f32.mrf.mxu0
        %v389 = vadd.f32 0.0, %v388
        %390 = vdwg.mxu0
        %391 = vmatpush.bf16.xpose.msra.mxu0 0
        %392 = vmatpush.bf16.xpose.msra.mxu0 0
        %393 = vmatpush.bf16.xpose.msra.mxu0 0
        %394 = vmatpush.bf16.xpose.msra.mxu0 0
        %395 = vmatpush.bf16.xpose.msra.mxu0 0
        %396 = vmatpush.bf16.xpose.msra.mxu0 0
        %397 = vmatpush.bf16.xpose.msra.mxu0 0
        %398 = vmatpush.bf16.xpose.msra.mxu0 %v369
        %399 = vmatmul.bf16.gmra.mxu0 %v358
        %v400 = vpop.f32.mrf.mxu0
        %v401 = vadd.f32 %v382, %v400
        %v402 = vpop.f32.mrf.mxu0
        %v403 = vadd.f32 %v384, %v402
        %404 = vmatmul.bf16.gmra.mxu0 %v360
        %v405 = vpop.f32.mrf.mxu0
        %v406 = vadd.f32 %v387, %v405
        %v407 = vpop.f32.mrf.mxu0
        %v408 = vadd.f32 %v389, %v407
        %409 = vdwg.mxu0
        %v410 = vadd.f32 %v341, %v401
        %v411 = vadd.f32 %v342, %v403
        %v412 = vadd.f32 %v343, %v406
        %v413 = vadd.f32 %v344, %v408
        %vm414 = vcmask 64512
        %415 = vst.msk [vmem:[#allocation2] sm:$0xff] %vm414, %v410
        %416 = vst.msk [vmem:[#allocation2 + $0x8] sm:$0xff] %vm414, %v411
        %417 = vst.msk [vmem:[#allocation2 + $0x10] sm:$0xff] %vm414, %v412
        %418 = vst.msk [vmem:[#allocation2 + $0x18] sm:$0xff] %vm414, %v413
        %v419 = vld [vmem:[#allocation3] sm:$0xff]
        %v420 = vunpack.c.l.bf16 %v328
        %v421 = vunpack.c.h.bf16 %v328
        %v422 = vadd.f32 %v420, %v421
        %423 = vadd.xlane.f32.xlu0 %v422
        %v424 = vpop.xlane.xlu0 %423
        %v425 = vadd.f32 %v419, %v424
        %vm426 = vcmask 7168
        %427 = vst.msk [vmem:[#allocation3] sm:$0xff] %vm426, %v425
        // Predicated region
        $region57: #{tpu_custom_call.1} parent=35 // pred_check
          %p428 = pneg %p312
        $region58: #{tpu_custom_call.1} parent=35 // pred_check_branch
          %430 = sbr.rel (%p428) target = $region60
        $region59: #{tpu_custom_call.1} parent=35 // pred_region
          %v431 = vld [vmem:[#allocation9] sm:$0xff]
          %v432 = vld [vmem:[#allocation9 + $0x8] sm:$0xff]
          %v433 = vld [vmem:[#allocation9 + $0x10] sm:$0xff]
          %v434 = vld [vmem:[#allocation9 + $0x18] sm:$0xff]
          %v435 = vld [vmem:[#allocation9 + $0x20] sm:$0xff]
          %v436 = vld [vmem:[#allocation9 + $0x28] sm:$0xff]
          %v437 = vld [vmem:[#allocation9 + $0x30] sm:$0xff]
          %v438 = vld [vmem:[#allocation9 + $0x38] sm:$0xff]
          %v439 = vld [vmem:[#allocation9 + $0x40] sm:$0xff]
          %v440 = vld [vmem:[#allocation9 + $0x48] sm:$0xff]
          %v441 = vld [vmem:[#allocation9 + $0x50] sm:$0xff]
          %v442 = vld [vmem:[#allocation9 + $0x58] sm:$0xff]
          %v443 = vld [vmem:[#allocation9 + $0x60] sm:$0xff]
          %v444 = vld [vmem:[#allocation9 + $0x68] sm:$0xff]
          %v445 = vld [vmem:[#allocation9 + $0x70] sm:$0xff]
          %v446 = vld [vmem:[#allocation9 + $0x78] sm:$0xff]
          %v447 = vld [vmem:[#allocation10] sm:$0xf]
          %v448 = vld [vmem:[#allocation3] sm:$0xff]
          %vm449 = vcmp.gt.f32.partialorder %v448, 0.0
          %v450 = vmax.f32 %v448, 1.0
          %v451 = vrcp.pop %v450
          %v452 = vmul.f32 %v450, %v451
          %v453 = vsub.f32 1.0, %v452
          %v454 = vmul.f32 %v451, %v453
          %v455 = vadd.f32 %v451, %v454
          %vm456 = vweird.f32 %v450
          %vm457 = vweird.f32 %v451
          %vm458 = vmor %vm456, %vm457
          %v459 = vsel %vm458, %v451, %v455
          %v460 = vand.u32 2147483647, %v450
          %vm461 = vcmp.eq.f32.partialorder %v460, 8.507059e+37
          %v462 = vand.u32 %v450, 2147483648
          %v463 = vor.u32 1.1754944e-38, %v462
          %v464 = vsel %vm461, %v463, %v459
          %v465 = vmul.f32 1.0, %v464
          %v466 = vsel %vm449, %v465, 0.0
          %v467 = vld [vmem:[#allocation2] sm:$0xff]
          %v468 = vld [vmem:[#allocation2 + $0x8] sm:$0xff]
          %v469 = vld [vmem:[#allocation2 + $0x10] sm:$0xff]
          %v470 = vld [vmem:[#allocation2 + $0x18] sm:$0xff]
          %471 = vxpose.xlu0.b32.start [1/16] %v467, 128
          %472 = vxpose.xlu0.b32.cont [2/16] %v468, 128
          %473 = vxpose.xlu0.b32.cont [3/16] %v469, 128
          %474 = vxpose.xlu0.b32.cont [4/16] %v470, 128
          %475 = vxpose.xlu0.b32.cont [5/16] 0.0, 128
          %476 = vxpose.xlu0.b32.cont [6/16] 0.0, 128
          %477 = vxpose.xlu0.b32.cont [7/16] 0.0, 128
          %478 = vxpose.xlu0.b32.cont [8/16] 0.0, 128
          %479 = vxpose.xlu0.b32.cont [9/16] 0.0, 128
          %480 = vxpose.xlu0.b32.cont [10/16] 0.0, 128
          %481 = vxpose.xlu0.b32.cont [11/16] 0.0, 128
          %482 = vxpose.xlu0.b32.cont [12/16] 0.0, 128
          %483 = vxpose.xlu0.b32.cont [13/16] 0.0, 128
          %484 = vxpose.xlu0.b32.cont [14/16] 0.0, 128
          %485 = vxpose.xlu0.b32.cont [15/16] 0.0, 128
          %486 = vxpose.xlu0.b32.end [16/16] 0.0, 128
          %v487 = vpop.trf.xlu0
          %v488 = vpop.trf.xlu0
          %v489 = vpop.trf.xlu0
          %v490 = vpop.trf.xlu0
          %v491 = vpop.trf.xlu0
          %v492 = vpop.trf.xlu0
          %v493 = vpop.trf.xlu0
          %v494 = vpop.trf.xlu0
          %v495 = vpop.trf.xlu0
          %v496 = vpop.trf.xlu0
          %v497 = vpop.trf.xlu0
          %v498 = vpop.trf.xlu0
          %v499 = vpop.trf.xlu0
          %v500 = vpop.trf.xlu0
          %v501 = vpop.trf.xlu0
          %v502 = vpop.trf.xlu0
          %vm503 = vcmask 261120
          %v505 = vsel %vm503, %v487, 0
          %507 = vmatpush.msra.mxu0 0.0
          %508 = vmatpush.msra.mxu0 0.0
          %509 = vmatpush.msra.mxu0 0.0
          %510 = vmatpush.msra.mxu0 0.0
          %511 = vmatpush.msra.mxu0 0.0
          %512 = vmatpush.msra.mxu0 0.0
          %513 = vmatpush.msra.mxu0 0.0
          %514 = vmatpush.msra.mxu0 0.0
          %515 = vmatpush.msra.mxu0 0.0
          %516 = vmatpush.msra.mxu0 0.0
          %517 = vmatpush.msra.mxu0 0.0
          %518 = vmatpush.msra.mxu0 0.0
          %519 = vmatpush.msra.mxu0 %v443
          %520 = vmatpush.msra.mxu0 %v439
          %521 = vmatpush.msra.mxu0 %v435
          %522 = vmatpush.msra.mxu0 %v431
          %523 = vmatmul.f32.gmra.mxu0 %v505
          %v524 = vpop.f32.mrf.mxu0
          %v525 = vadd.f32 0.0, %v524
          %526 = vdwg.mxu0
          %527 = vmatpush.msra.mxu0 0.0
          %528 = vmatpush.msra.mxu0 0.0
          %529 = vmatpush.msra.mxu0 0.0
          %530 = vmatpush.msra.mxu0 0.0
          %531 = vmatpush.msra.mxu0 0.0
          %532 = vmatpush.msra.mxu0 0.0
          %533 = vmatpush.msra.mxu0 0.0
          %534 = vmatpush.msra.mxu0 0.0
          %535 = vmatpush.msra.mxu0 0.0
          %536 = vmatpush.msra.mxu0 0.0
          %537 = vmatpush.msra.mxu0 0.0
          %538 = vmatpush.msra.mxu0 0.0
          %539 = vmatpush.msra.mxu0 %v444
          %540 = vmatpush.msra.mxu0 %v440
          %541 = vmatpush.msra.mxu0 %v436
          %542 = vmatpush.msra.mxu0 %v432
          %543 = vmatmul.f32.gmra.mxu0 %v505
          %v544 = vpop.f32.mrf.mxu0
          %v545 = vadd.f32 0.0, %v544
          %546 = vdwg.mxu0
          %547 = vmatpush.msra.mxu0 0.0
          %548 = vmatpush.msra.mxu0 0.0
          %549 = vmatpush.msra.mxu0 0.0
          %550 = vmatpush.msra.mxu0 0.0
          %551 = vmatpush.msra.mxu0 0.0
          %552 = vmatpush.msra.mxu0 0.0
          %553 = vmatpush.msra.mxu0 0.0
          %554 = vmatpush.msra.mxu0 0.0
          %555 = vmatpush.msra.mxu0 0.0
          %556 = vmatpush.msra.mxu0 0.0
          %557 = vmatpush.msra.mxu0 0.0
          %558 = vmatpush.msra.mxu0 0.0
          %559 = vmatpush.msra.mxu0 %v445
          %560 = vmatpush.msra.mxu0 %v441
          %561 = vmatpush.msra.mxu0 %v437
          %562 = vmatpush.msra.mxu0 %v433
          %563 = vmatmul.f32.gmra.mxu0 %v505
          %v564 = vpop.f32.mrf.mxu0
          %v565 = vadd.f32 0.0, %v564
          %566 = vdwg.mxu0
          %567 = vmatpush.msra.mxu0 0.0
          %568 = vmatpush.msra.mxu0 0.0
          %569 = vmatpush.msra.mxu0 0.0
          %570 = vmatpush.msra.mxu0 0.0
          %571 = vmatpush.msra.mxu0 0.0
          %572 = vmatpush.msra.mxu0 0.0
          %573 = vmatpush.msra.mxu0 0.0
          %574 = vmatpush.msra.mxu0 0.0
          %575 = vmatpush.msra.mxu0 0.0
          %576 = vmatpush.msra.mxu0 0.0
          %577 = vmatpush.msra.mxu0 0.0
          %578 = vmatpush.msra.mxu0 0.0
          %579 = vmatpush.msra.mxu0 %v446
          %580 = vmatpush.msra.mxu0 %v442
          %581 = vmatpush.msra.mxu0 %v438
          %582 = vmatpush.msra.mxu0 %v434
          %583 = vmatmul.f32.gmra.mxu0 %v505
          %v584 = vpop.f32.mrf.mxu0
          %v585 = vadd.f32 0.0, %v584
          %586 = vdwg.mxu0
          %588 = vset.pattern.permute.xlu0 0
          %589 = vperm.xlu0 %588, %v466
          %v590 = vpop.permute.xlu0 %589
          %v592 = vmul.f32 %v525, %v590
          %v593 = vmul.f32 %v545, %v590
          %v594 = vmul.f32 %v565, %v590
          %v595 = vmul.f32 %v585, %v590
          %v597 = vperm.slane %v447, 0
          %v598 = vperm.slane %v447, 1
          %v599 = vperm.slane %v447, 2
          %v600 = vperm.slane %v447, 3
          %v605 = vadd.f32 %v592, %v597
          %v606 = vadd.f32 %v593, %v598
          %v607 = vadd.f32 %v594, %v599
          %v608 = vadd.f32 %v595, %v600
          %609 = vst [vmem:[%s308] sm:$0xff] %v605
          %610 = vst [vmem:[%s308 + $0x8] sm:$0xff] %v606
          %611 = vst [vmem:[%s308 + $0x10] sm:$0xff] %v607
          %612 = vst [vmem:[%s308 + $0x18] sm:$0xff] %v608
        $region60: #{tpu_custom_call.1} parent=35 // pred_fallthru
          _
        %s613 = sand.u32 %s143, 1
        %s614 = scalar_lea.sflag [#allocation6], %s613
        %s615 = sand.u32 %s143, 1
        %s616 = smul.addr %s615, 32
        %s617 = scalar_lea.vmem [#allocation12], %s616
        // Predicated region
        $region61: #{tpu_custom_call.1} parent=35 // pred_check
          %p618 = pneg %p153
        $region62: #{tpu_custom_call.1} parent=35 // pred_check_branch
          %620 = sbr.rel (%p618) target = $region64
        $region63: #{tpu_custom_call.1} parent=35 // pred_region
          %622 = vsyncadd %s614, 0
          %s623 = smul.addr %s29, 4
          %s624 = smul.addr %s623, 8
          %s625 = scalar_lea.hbm %s4, %s624
          %s627 = sshll.u32 %s617, 4
          %s628 = int_to_ptr.vmem [resolvable:$true] %s627
          %s629 = sshll.u32 %s625, 4
          %s630 = int_to_ptr.hbm [resolvable:$true] %s629
          %632 = dma.vmem_to_hbm [thread:$0]  %s628, 512, %s630, %s614
        $region64: #{tpu_custom_call.1} parent=35 // pred_fallthru
          _
      $region36: #{tpu_custom_call.1} parent=5 // pred_fallthru
        _
      %p633 = scmp.le.s32.totalorder 2, %s20
      // Predicated region
      $region65: #{tpu_custom_call.1} parent=5 // pred_check
        %p634 = pneg %p633
      $region66: #{tpu_custom_call.1} parent=5 // pred_check_branch
        %636 = sbr.rel (%p634) target = $region68
      $region67: #{tpu_custom_call.1} parent=5 // pred_region
        %s637 = ssub.s32 %s20, 2
        // Predicated region
        $region69: #{tpu_custom_call.1} parent=67 // pred_check
          %p638 = pneg %p159
        $region70: #{tpu_custom_call.1} parent=67 // pred_check_branch
          %640 = sbr.rel (%p638) target = $region72
        $region71: #{tpu_custom_call.1} parent=67 // pred_region
          %s641 = sand.u32 %s144, 1
          %s642 = scalar_lea.sflag [#allocation6], %s641
          %s643 = sand.u32 %s144, 1
          %s644 = smul.addr %s643, 32
          %s645 = scalar_lea.vmem [#allocation12], %s644
          %647 = dma.done %s642, 512
        $region72: #{tpu_custom_call.1} parent=67 // pred_fallthru
          _
      $region68: #{tpu_custom_call.1} parent=5 // pred_fallthru
        _
    $region6: #{tpu_custom_call.1} parent=1 // loop_footer
      %s24 = sadd.s32 1, %s20
    $region7: #{tpu_custom_call.1} parent=1 // loop_footer_branch
      %19 = sbr.rel target = $region3
    $region8: #{tpu_custom_call.1} parent=1 // loop_exit
      _
    %648 = vsyncpa [#allocation5], 1
    %s649 = scalar_lea.sflag [#allocation5], 1
    %650 = vsyncpa %s649, 1
    %651 = vsyncpa [#allocation8], 1
    %s652 = scalar_lea.sflag [#allocation8], 1
    %653 = vsyncpa %s652, 1
    %654 = vsyncpa [#allocation11], 1
    %655 = vsyncpa [#allocation6], 1
    %s656 = scalar_lea.sflag [#allocation6], 1
    %657 = vsyncpa %s656, 1

</llo_original>
